<compile_context>
chip_gen: v7x
topology: tpu7x:2x2x1
jax: 0.10.0
libtpu: 0.0.40
codegen_flags: <defaults>
</compile_context>

<pallas_src>
import functools

import jax
import jax.numpy as jnp
from jax import lax
from jax.experimental import pallas as pl
from jax.experimental.pallas import tpu as pltpu

N_GAUSS = 25
HEAD_OUT = 4                       # each head is Linear(200, 4)
N_STATS = 3                        # mu, sigma, pai
SLAB = HEAD_OUT * N_GAUSS          # 100 columns per stat slab
HEADS_DIM = N_STATS * SLAB         # 300 fused head outputs

H1, H2, H3 = 128, 256, 200         # MLP widths


def _round_up(x, m):
    return ((x + m - 1) // m) * m


def fused_backward_kernel(x0_ref, w1_ref, b1_ref, w2_ref, b2_ref,
                          w3_ref, b3_ref, wh_ref, bh_ref,
                          gumbel_ref, rand_ref, out_ref):
    x0 = x0_ref[...]                               # [TB, 3]  f32
    w1 = w1_ref[...]                               # [3, H1]  f32

    # ---- Layer 1 (K=3): three VPU broadcast multiply-adds (skip MXU push/drain) ----
    h = b1_ref[...] + x0[:, 0:1] * w1[0:1, :]
    h = h + x0[:, 1:2] * w1[1:2, :]
    h = h + x0[:, 2:3] * w1[2:3, :]
    h = jnp.maximum(h, 0.0)                        # [TB, 128]

    # ---- Layers 2/3 + fused 75 heads on the MXU (bf16 operands, f32 accumulation) ----
    h = jnp.dot(h.astype(jnp.bfloat16), w2_ref[...],
                preferred_element_type=jnp.float32) + b2_ref[...]
    h = jnp.maximum(h, 0.0)                        # [TB, 256]
    h = jnp.dot(h.astype(jnp.bfloat16), w3_ref[...],
                preferred_element_type=jnp.float32) + b3_ref[...]
    h = jnp.maximum(h, 0.0)                        # [TB, 200]
    heads = jnp.dot(h.astype(jnp.bfloat16), wh_ref[...],
                    preferred_element_type=jnp.float32) + bh_ref[...]   # [TB, 300]
    # heads column layout: [ mu(100) | sigma(100) | pai(100) ], within each slab
    # column = dim*25 + gauss  (static lane slices below, no transposes).

    gumbel = gumbel_ref[...]                       # [TB, 100]  (dim, gauss) ordering
    rand = rand_ref[...]                           # [TB, 4]    N(0,1)
    tb = rand.shape[0]

    lane = lax.broadcasted_iota(jnp.int32, (tb, HEAD_OUT), 1)
    out = jnp.zeros((tb, HEAD_OUT), jnp.float32)
    for d in range(HEAD_OUT):                      # static, 4 iterations
        lo, hi = d * N_GAUSS, (d + 1) * N_GAUSS
        mu_d = heads[:, lo:hi]                             # [TB, 25]
        sigma_d = jnp.abs(heads[:, SLAB + lo:SLAB + hi])   # torch.abs(sigma)
        pai_d = jnp.abs(heads[:, 2 * SLAB + lo:2 * SLAB + hi])  # torch.abs(pai)

        # Gumbel-max sampling over the gaussian axis == Categorical(pai)
        # (distributionally equal to torch.multinomial with replacement).
        # log(0) = -inf correctly makes zero-weight components unselectable.
        score = jnp.log(pai_d) + gumbel[:, lo:hi]
        m = jnp.max(score, axis=-1, keepdims=True)
        iota = lax.broadcasted_iota(jnp.int32, score.shape, 1)
        idx = jnp.min(jnp.where(score >= m, iota, jnp.int32(N_GAUSS)),
                      axis=-1, keepdims=True)
        onehot = (iota == idx).astype(jnp.float32)
        mu_sel = jnp.sum(onehot * mu_d, axis=-1, keepdims=True)      # [TB, 1]
        sg_sel = jnp.sum(onehot * sigma_d, axis=-1, keepdims=True)   # [TB, 1]

        col = rand[:, d:d + 1] * sg_sel + mu_sel                     # reparametrization
        out = out + jnp.where(lane == d, col, 0.0)
    out_ref[...] = out                                               # single [TB, 4] store


def init_params(key):
    """Deterministic nn.Linear-style init (uniform +-1/sqrt(fan_in)).

    The 75 Linear(200,4) heads are fused into one [200, 300] matrix whose columns
    are permuted to (stat, dim, gauss) order: col = stat*100 + dim*25 + gauss
    (stat 0=mu, 1=sigma, 2=pai).  Since the init is i.i.d. random, this is just a
    fixed (free) column permutation of the PyTorch self.param layout.
    """
    def lin(k, fin, fout, wdtype=jnp.float32):
        kw, kb = jax.random.split(k)
        bound = 1.0 / jnp.sqrt(jnp.float32(fin))
        w = jax.random.uniform(kw, (fin, fout), jnp.float32, -bound, bound)
        b = jax.random.uniform(kb, (1, fout), jnp.float32, -bound, bound)
        return w.astype(wdtype), b

    k1, k2, k3, k4 = jax.random.split(key, 4)
    w1, b1 = lin(k1, 3, H1)                         # f32: layer 1 runs on the VPU
    w2, b2 = lin(k2, H1, H2, jnp.bfloat16)          # bf16 weights, f32 accumulate
    w3, b3 = lin(k3, H2, H3, jnp.bfloat16)
    wh, bh = lin(k4, H3, HEADS_DIM, jnp.bfloat16)
    return dict(w1=w1, b1=b1, w2=w2, b2=b2, w3=w3, b3=b3, wh=wh, bh=bh)


@functools.partial(jax.jit, static_argnames=("max_tb",))
def backward_forward(x0, params, key, *, max_tb=256):
    B = x0.shape[0]
    TB = max_tb if B >= max_tb else _round_up(B, 8)     # batch tile (MXU rows)
    B_pad = _round_up(B, TB)
    if B_pad != B:
        x0 = jnp.pad(x0, ((0, B_pad - B), (0, 0)))

    k_rand, k_gumbel = jax.random.split(key)
    rand = jax.random.normal(k_rand, (B_pad, HEAD_OUT), jnp.float32)
    gumbel = jax.random.gumbel(k_gumbel, (B_pad, SLAB), jnp.float32)

    def batch_spec(shape):
        return pl.BlockSpec(shape, lambda i: (i, 0))

    def pinned(shape):
        return pl.BlockSpec(shape, lambda i: (0, 0))

    out = pl.pallas_call(
        fused_backward_kernel,
        out_shape=jax.ShapeDtypeStruct((B_pad, HEAD_OUT), jnp.float32),
        grid=(pl.cdiv(B_pad, TB),),
        in_specs=[
            batch_spec((TB, 3)),                  # x0
            pinned((3, H1)), pinned((1, H1)),     # w1, b1
            pinned((H1, H2)), pinned((1, H2)),    # w2, b2
            pinned((H2, H3)), pinned((1, H3)),    # w3, b3
            pinned((H3, HEADS_DIM)), pinned((1, HEADS_DIM)),  # wh, bh
            batch_spec((TB, SLAB)),               # gumbel noise
            batch_spec((TB, HEAD_OUT)),           # N(0,1) reparam noise
        ],
        out_specs=batch_spec((TB, HEAD_OUT)),
        compiler_params=pltpu.CompilerParams(
            dimension_semantics=("parallel",)),
    )(x0, params["w1"], params["b1"], params["w2"], params["b2"],
      params["w3"], params["b3"], params["wh"], params["bh"], gumbel, rand)

    return out[:B]


# TODO(synk): the `pretrain is not None` branch (external pretrained model + 10-step
# resampling/rejection loop) is out of scope; only the default pretrain=None path is implemented.

if __name__ == "__main__":
    key = jax.random.PRNGKey(0)
    k_param, k_x, k_sample = jax.random.split(key, 3)

    B = 8
    x0 = jax.random.normal(k_x, (B, 3), jnp.float32)
    params = init_params(k_param)

    out = backward_forward(x0, params, k_sample)
    out = jax.block_until_ready(out)
    assert out.shape == (B, HEAD_OUT) and out.dtype == jnp.float32
    assert bool(jnp.all(jnp.isfinite(out)))
    print("KERNEL_OK")
</pallas_src>

<mosaic_0001>
module attributes {stable_mosaic.version = 11 : i64} {
  func.func @fused_backward_kernel(%arg0: i32, %arg1: memref<8x3xf32, #tpu.memory_space<vmem>>, %arg2: memref<3x128xf32, #tpu.memory_space<vmem>>, %arg3: memref<1x128xf32, #tpu.memory_space<vmem>>, %arg4: memref<128x256xbf16, #tpu.memory_space<vmem>>, %arg5: memref<1x256xf32, #tpu.memory_space<vmem>>, %arg6: memref<256x200xbf16, #tpu.memory_space<vmem>>, %arg7: memref<1x200xf32, #tpu.memory_space<vmem>>, %arg8: memref<200x300xbf16, #tpu.memory_space<vmem>>, %arg9: memref<1x300xf32, #tpu.memory_space<vmem>>, %arg10: memref<8x100xf32, #tpu.memory_space<vmem>>, %arg11: memref<8x4xf32, #tpu.memory_space<vmem>>, %arg12: memref<8x4xf32, #tpu.memory_space<vmem>>) attributes {dimension_semantics = [#tpu.dimension_semantics<parallel>], iteration_bounds = array<i64: 1>, scalar_prefetch = 0 : i64, scratch_operands = 0 : i64, tpu.core_type = #tpu.core_type<tc>, window_params = [{transform_indices = @transform_0, window_bounds = array<i64: 8, 3>}, {pipeline_mode = #tpu.pipeline_mode<synchronous>, transform_indices = @transform_1, window_bounds = array<i64: 3, 128>}, {pipeline_mode = #tpu.pipeline_mode<synchronous>, transform_indices = @transform_2, window_bounds = array<i64: 1, 128>}, {pipeline_mode = #tpu.pipeline_mode<synchronous>, transform_indices = @transform_3, window_bounds = array<i64: 128, 256>}, {pipeline_mode = #tpu.pipeline_mode<synchronous>, transform_indices = @transform_4, window_bounds = array<i64: 1, 256>}, {pipeline_mode = #tpu.pipeline_mode<synchronous>, transform_indices = @transform_5, window_bounds = array<i64: 256, 200>}, {pipeline_mode = #tpu.pipeline_mode<synchronous>, transform_indices = @transform_6, window_bounds = array<i64: 1, 200>}, {pipeline_mode = #tpu.pipeline_mode<synchronous>, transform_indices = @transform_7, window_bounds = array<i64: 200, 300>}, {pipeline_mode = #tpu.pipeline_mode<synchronous>, transform_indices = @transform_8, window_bounds = array<i64: 1, 300>}, {transform_indices = @transform_9, window_bounds = array<i64: 8, 100>}, {transform_indices = @transform_10, window_bounds = array<i64: 8, 4>}, {transform_indices = @transform_11, window_bounds = array<i64: 8, 4>}]} {
    %c0 = arith.constant 0 : index
    %c0_0 = arith.constant 0 : index
    %0 = vector.load %arg1[%c0, %c0_0] : memref<8x3xf32, #tpu.memory_space<vmem>>, vector<8x3xf32>
    %c0_1 = arith.constant 0 : index
    %c0_2 = arith.constant 0 : index
    %1 = vector.load %arg2[%c0_1, %c0_2] : memref<3x128xf32, #tpu.memory_space<vmem>>, vector<3x128xf32>
    %c0_3 = arith.constant 0 : index
    %c0_4 = arith.constant 0 : index
    %2 = vector.load %arg3[%c0_3, %c0_4] : memref<1x128xf32, #tpu.memory_space<vmem>>, vector<1x128xf32>
    %3 = vector.extract_strided_slice %0 {offsets = [0, 0], sizes = [8, 1], strides = [1, 1]} : vector<8x3xf32> to vector<8x1xf32>
    %4 = vector.extract_strided_slice %1 {offsets = [0, 0], sizes = [1, 128], strides = [1, 1]} : vector<3x128xf32> to vector<1x128xf32>
    %5 = vector.broadcast %3 : vector<8x1xf32> to vector<8x128xf32>
    %6 = vector.broadcast %4 : vector<1x128xf32> to vector<8x128xf32>
    %7 = arith.mulf %5, %6 : vector<8x128xf32>
    %8 = vector.broadcast %2 : vector<1x128xf32> to vector<8x128xf32>
    %9 = arith.addf %8, %7 : vector<8x128xf32>
    %10 = vector.extract_strided_slice %0 {offsets = [0, 1], sizes = [8, 1], strides = [1, 1]} : vector<8x3xf32> to vector<8x1xf32>
    %11 = vector.extract_strided_slice %1 {offsets = [1, 0], sizes = [1, 128], strides = [1, 1]} : vector<3x128xf32> to vector<1x128xf32>
    %12 = vector.broadcast %10 : vector<8x1xf32> to vector<8x128xf32>
    %13 = vector.broadcast %11 : vector<1x128xf32> to vector<8x128xf32>
    %14 = arith.mulf %12, %13 : vector<8x128xf32>
    %15 = arith.addf %9, %14 : vector<8x128xf32>
    %16 = vector.extract_strided_slice %0 {offsets = [0, 2], sizes = [8, 1], strides = [1, 1]} : vector<8x3xf32> to vector<8x1xf32>
    %17 = vector.extract_strided_slice %1 {offsets = [2, 0], sizes = [1, 128], strides = [1, 1]} : vector<3x128xf32> to vector<1x128xf32>
    %18 = vector.broadcast %16 : vector<8x1xf32> to vector<8x128xf32>
    %19 = vector.broadcast %17 : vector<1x128xf32> to vector<8x128xf32>
    %20 = arith.mulf %18, %19 : vector<8x128xf32>
    %21 = arith.addf %15, %20 : vector<8x128xf32>
    %cst = arith.constant 0.000000e+00 : f32
    %22 = vector.broadcast %cst : f32 to vector<8x128xf32>
    %23 = arith.maximumf %21, %22 : vector<8x128xf32>
    %24 = arith.truncf %23 : vector<8x128xf32> to vector<8x128xbf16>
    %c0_5 = arith.constant 0 : index
    %c0_6 = arith.constant 0 : index
    %25 = vector.load %arg4[%c0_5, %c0_6] : memref<128x256xbf16, #tpu.memory_space<vmem>>, vector<128x256xbf16>
    %cst_7 = arith.constant dense<0.000000e+00> : vector<8x256xf32>
    %26 = tpu.matmul %24, %25, %cst_7 {dimension_numbers = #tpu.dot_dimension_numbers<[1], [0], [0], [1], [0, 0, 1, 1], [], []>} : vector<8x128xbf16>, vector<128x256xbf16>, vector<8x256xf32> -> vector<8x256xf32>
    %c0_8 = arith.constant 0 : index
    %c0_9 = arith.constant 0 : index
    %27 = vector.load %arg5[%c0_8, %c0_9] : memref<1x256xf32, #tpu.memory_space<vmem>>, vector<1x256xf32>
    %28 = vector.broadcast %27 : vector<1x256xf32> to vector<8x256xf32>
    %29 = arith.addf %26, %28 : vector<8x256xf32>
    %cst_10 = arith.constant 0.000000e+00 : f32
    %30 = vector.broadcast %cst_10 : f32 to vector<8x256xf32>
    %31 = arith.maximumf %29, %30 : vector<8x256xf32>
    %32 = arith.truncf %31 : vector<8x256xf32> to vector<8x256xbf16>
    %c0_11 = arith.constant 0 : index
    %c0_12 = arith.constant 0 : index
    %33 = vector.load %arg6[%c0_11, %c0_12] : memref<256x200xbf16, #tpu.memory_space<vmem>>, vector<256x200xbf16>
    %cst_13 = arith.constant dense<0.000000e+00> : vector<8x200xf32>
    %34 = tpu.matmul %32, %33, %cst_13 {dimension_numbers = #tpu.dot_dimension_numbers<[1], [0], [0], [1], [0, 0, 1, 1], [], []>} : vector<8x256xbf16>, vector<256x200xbf16>, vector<8x200xf32> -> vector<8x200xf32>
    %c0_14 = arith.constant 0 : index
    %c0_15 = arith.constant 0 : index
    %35 = vector.load %arg7[%c0_14, %c0_15] : memref<1x200xf32, #tpu.memory_space<vmem>>, vector<1x200xf32>
    %36 = vector.broadcast %35 : vector<1x200xf32> to vector<8x200xf32>
    %37 = arith.addf %34, %36 : vector<8x200xf32>
    %cst_16 = arith.constant 0.000000e+00 : f32
    %38 = vector.broadcast %cst_16 : f32 to vector<8x200xf32>
    %39 = arith.maximumf %37, %38 : vector<8x200xf32>
    %40 = arith.truncf %39 : vector<8x200xf32> to vector<8x200xbf16>
    %c0_17 = arith.constant 0 : index
    %c0_18 = arith.constant 0 : index
    %41 = vector.load %arg8[%c0_17, %c0_18] : memref<200x300xbf16, #tpu.memory_space<vmem>>, vector<200x300xbf16>
    %cst_19 = arith.constant dense<0.000000e+00> : vector<8x300xf32>
    %42 = tpu.matmul %40, %41, %cst_19 {dimension_numbers = #tpu.dot_dimension_numbers<[1], [0], [0], [1], [0, 0, 1, 1], [], []>} : vector<8x200xbf16>, vector<200x300xbf16>, vector<8x300xf32> -> vector<8x300xf32>
    %c0_20 = arith.constant 0 : index
    %c0_21 = arith.constant 0 : index
    %43 = vector.load %arg9[%c0_20, %c0_21] : memref<1x300xf32, #tpu.memory_space<vmem>>, vector<1x300xf32>
    %44 = vector.broadcast %43 : vector<1x300xf32> to vector<8x300xf32>
    %45 = arith.addf %42, %44 : vector<8x300xf32>
    %c0_22 = arith.constant 0 : index
    %c0_23 = arith.constant 0 : index
    %46 = vector.load %arg10[%c0_22, %c0_23] : memref<8x100xf32, #tpu.memory_space<vmem>>, vector<8x100xf32>
    %c0_24 = arith.constant 0 : index
    %c0_25 = arith.constant 0 : index
    %47 = vector.load %arg11[%c0_24, %c0_25] : memref<8x4xf32, #tpu.memory_space<vmem>>, vector<8x4xf32>
    %48 = tpu.iota {dimensions = array<i32: 1>} : vector<8x4xi32>
    %cst_26 = arith.constant 0.000000e+00 : f32
    %49 = vector.broadcast %cst_26 : f32 to vector<8x4xf32>
    %50 = vector.extract_strided_slice %45 {offsets = [0, 0], sizes = [8, 25], strides = [1, 1]} : vector<8x300xf32> to vector<8x25xf32>
    %51 = vector.extract_strided_slice %45 {offsets = [0, 100], sizes = [8, 25], strides = [1, 1]} : vector<8x300xf32> to vector<8x25xf32>
    %52 = math.absf %51 : vector<8x25xf32>
    %53 = vector.extract_strided_slice %45 {offsets = [0, 200], sizes = [8, 25], strides = [1, 1]} : vector<8x300xf32> to vector<8x25xf32>
    %54 = math.absf %53 : vector<8x25xf32>
    %55 = math.log %54 : vector<8x25xf32>
    %56 = vector.extract_strided_slice %46 {offsets = [0, 0], sizes = [8, 25], strides = [1, 1]} : vector<8x100xf32> to vector<8x25xf32>
    %57 = arith.addf %55, %56 : vector<8x25xf32>
    %cst_27 = arith.constant dense<0xFF800000> : vector<8xf32>
    %58 = vector.multi_reduction <maximumf>, %57, %cst_27 [1] : vector<8x25xf32> to vector<8xf32>
    %59 = vector.shape_cast %58 : vector<8xf32> to vector<8x1xf32>
    %60 = tpu.iota {dimensions = array<i32: 1>} : vector<8x25xi32>
    %61 = vector.broadcast %59 : vector<8x1xf32> to vector<8x25xf32>
    %62 = arith.cmpf oge, %57, %61 : vector<8x25xf32>
    %c25_i32 = arith.constant 25 : i32
    %63 = vector.broadcast %c25_i32 : i32 to vector<8x25xi32>
    %64 = arith.select %62, %60, %63 : vector<8x25xi1>, vector<8x25xi32>
    %cst_28 = arith.constant dense<2147483647> : vector<8xi32>
    %65 = vector.multi_reduction <minsi>, %64, %cst_28 [1] : vector<8x25xi32> to vector<8xi32>
    %66 = vector.shape_cast %65 : vector<8xi32> to vector<8x1xi32>
    %67 = vector.broadcast %66 : vector<8x1xi32> to vector<8x25xi32>
    %68 = arith.cmpi eq, %60, %67 : vector<8x25xi32>
    %69 = arith.extui %68 : vector<8x25xi1> to vector<8x25xi32>
    %70 = arith.sitofp %69 : vector<8x25xi32> to vector<8x25xf32>
    %71 = arith.mulf %70, %50 : vector<8x25xf32>
    %cst_29 = arith.constant dense<0.000000e+00> : vector<8xf32>
    %72 = vector.multi_reduction <add>, %71, %cst_29 [1] : vector<8x25xf32> to vector<8xf32>
    %73 = vector.shape_cast %72 : vector<8xf32> to vector<8x1xf32>
    %74 = arith.mulf %70, %52 : vector<8x25xf32>
    %cst_30 = arith.constant dense<0.000000e+00> : vector<8xf32>
    %75 = vector.multi_reduction <add>, %74, %cst_30 [1] : vector<8x25xf32> to vector<8xf32>
    %76 = vector.shape_cast %75 : vector<8xf32> to vector<8x1xf32>
    %77 = vector.extract_strided_slice %47 {offsets = [0, 0], sizes = [8, 1], strides = [1, 1]} : vector<8x4xf32> to vector<8x1xf32>
    %78 = arith.mulf %77, %76 : vector<8x1xf32>
    %79 = arith.addf %78, %73 : vector<8x1xf32>
    %c0_i32 = arith.constant 0 : i32
    %80 = vector.broadcast %c0_i32 : i32 to vector<8x4xi32>
    %81 = arith.cmpi eq, %48, %80 : vector<8x4xi32>
    %cst_31 = arith.constant 0.000000e+00 : f32
    %82 = vector.shape_cast %79 : vector<8x1xf32> to vector<8x1xf32>
    %83 = vector.broadcast %82 : vector<8x1xf32> to vector<8x4xf32>
    %84 = vector.broadcast %cst_31 : f32 to vector<8x4xf32>
    %85 = arith.select %81, %83, %84 : vector<8x4xi1>, vector<8x4xf32>
    %86 = arith.addf %49, %85 : vector<8x4xf32>
    %87 = vector.extract_strided_slice %45 {offsets = [0, 25], sizes = [8, 25], strides = [1, 1]} : vector<8x300xf32> to vector<8x25xf32>
    %88 = vector.extract_strided_slice %45 {offsets = [0, 125], sizes = [8, 25], strides = [1, 1]} : vector<8x300xf32> to vector<8x25xf32>
    %89 = math.absf %88 : vector<8x25xf32>
    %90 = vector.extract_strided_slice %45 {offsets = [0, 225], sizes = [8, 25], strides = [1, 1]} : vector<8x300xf32> to vector<8x25xf32>
    %91 = math.absf %90 : vector<8x25xf32>
    %92 = math.log %91 : vector<8x25xf32>
    %93 = vector.extract_strided_slice %46 {offsets = [0, 25], sizes = [8, 25], strides = [1, 1]} : vector<8x100xf32> to vector<8x25xf32>
    %94 = arith.addf %92, %93 : vector<8x25xf32>
    %cst_32 = arith.constant dense<0xFF800000> : vector<8xf32>
    %95 = vector.multi_reduction <maximumf>, %94, %cst_32 [1] : vector<8x25xf32> to vector<8xf32>
    %96 = vector.shape_cast %95 : vector<8xf32> to vector<8x1xf32>
    %97 = tpu.iota {dimensions = array<i32: 1>} : vector<8x25xi32>
    %98 = vector.broadcast %96 : vector<8x1xf32> to vector<8x25xf32>
    %99 = arith.cmpf oge, %94, %98 : vector<8x25xf32>
    %c25_i32_33 = arith.constant 25 : i32
    %100 = vector.broadcast %c25_i32_33 : i32 to vector<8x25xi32>
    %101 = arith.select %99, %97, %100 : vector<8x25xi1>, vector<8x25xi32>
    %cst_34 = arith.constant dense<2147483647> : vector<8xi32>
    %102 = vector.multi_reduction <minsi>, %101, %cst_34 [1] : vector<8x25xi32> to vector<8xi32>
    %103 = vector.shape_cast %102 : vector<8xi32> to vector<8x1xi32>
    %104 = vector.broadcast %103 : vector<8x1xi32> to vector<8x25xi32>
    %105 = arith.cmpi eq, %97, %104 : vector<8x25xi32>
    %106 = arith.extui %105 : vector<8x25xi1> to vector<8x25xi32>
    %107 = arith.sitofp %106 : vector<8x25xi32> to vector<8x25xf32>
    %108 = arith.mulf %107, %87 : vector<8x25xf32>
    %cst_35 = arith.constant dense<0.000000e+00> : vector<8xf32>
    %109 = vector.multi_reduction <add>, %108, %cst_35 [1] : vector<8x25xf32> to vector<8xf32>
    %110 = vector.shape_cast %109 : vector<8xf32> to vector<8x1xf32>
    %111 = arith.mulf %107, %89 : vector<8x25xf32>
    %cst_36 = arith.constant dense<0.000000e+00> : vector<8xf32>
    %112 = vector.multi_reduction <add>, %111, %cst_36 [1] : vector<8x25xf32> to vector<8xf32>
    %113 = vector.shape_cast %112 : vector<8xf32> to vector<8x1xf32>
    %114 = vector.extract_strided_slice %47 {offsets = [0, 1], sizes = [8, 1], strides = [1, 1]} : vector<8x4xf32> to vector<8x1xf32>
    %115 = arith.mulf %114, %113 : vector<8x1xf32>
    %116 = arith.addf %115, %110 : vector<8x1xf32>
    %c1_i32 = arith.constant 1 : i32
    %117 = vector.broadcast %c1_i32 : i32 to vector<8x4xi32>
    %118 = arith.cmpi eq, %48, %117 : vector<8x4xi32>
    %cst_37 = arith.constant 0.000000e+00 : f32
    %119 = vector.shape_cast %116 : vector<8x1xf32> to vector<8x1xf32>
    %120 = vector.broadcast %119 : vector<8x1xf32> to vector<8x4xf32>
    %121 = vector.broadcast %cst_37 : f32 to vector<8x4xf32>
    %122 = arith.select %118, %120, %121 : vector<8x4xi1>, vector<8x4xf32>
    %123 = arith.addf %86, %122 : vector<8x4xf32>
    %124 = vector.extract_strided_slice %45 {offsets = [0, 50], sizes = [8, 25], strides = [1, 1]} : vector<8x300xf32> to vector<8x25xf32>
    %125 = vector.extract_strided_slice %45 {offsets = [0, 150], sizes = [8, 25], strides = [1, 1]} : vector<8x300xf32> to vector<8x25xf32>
    %126 = math.absf %125 : vector<8x25xf32>
    %127 = vector.extract_strided_slice %45 {offsets = [0, 250], sizes = [8, 25], strides = [1, 1]} : vector<8x300xf32> to vector<8x25xf32>
    %128 = math.absf %127 : vector<8x25xf32>
    %129 = math.log %128 : vector<8x25xf32>
    %130 = vector.extract_strided_slice %46 {offsets = [0, 50], sizes = [8, 25], strides = [1, 1]} : vector<8x100xf32> to vector<8x25xf32>
    %131 = arith.addf %129, %130 : vector<8x25xf32>
    %cst_38 = arith.constant dense<0xFF800000> : vector<8xf32>
    %132 = vector.multi_reduction <maximumf>, %131, %cst_38 [1] : vector<8x25xf32> to vector<8xf32>
    %133 = vector.shape_cast %132 : vector<8xf32> to vector<8x1xf32>
    %134 = tpu.iota {dimensions = array<i32: 1>} : vector<8x25xi32>
    %135 = vector.broadcast %133 : vector<8x1xf32> to vector<8x25xf32>
    %136 = arith.cmpf oge, %131, %135 : vector<8x25xf32>
    %c25_i32_39 = arith.constant 25 : i32
    %137 = vector.broadcast %c25_i32_39 : i32 to vector<8x25xi32>
    %138 = arith.select %136, %134, %137 : vector<8x25xi1>, vector<8x25xi32>
    %cst_40 = arith.constant dense<2147483647> : vector<8xi32>
    %139 = vector.multi_reduction <minsi>, %138, %cst_40 [1] : vector<8x25xi32> to vector<8xi32>
    %140 = vector.shape_cast %139 : vector<8xi32> to vector<8x1xi32>
    %141 = vector.broadcast %140 : vector<8x1xi32> to vector<8x25xi32>
    %142 = arith.cmpi eq, %134, %141 : vector<8x25xi32>
    %143 = arith.extui %142 : vector<8x25xi1> to vector<8x25xi32>
    %144 = arith.sitofp %143 : vector<8x25xi32> to vector<8x25xf32>
    %145 = arith.mulf %144, %124 : vector<8x25xf32>
    %cst_41 = arith.constant dense<0.000000e+00> : vector<8xf32>
    %146 = vector.multi_reduction <add>, %145, %cst_41 [1] : vector<8x25xf32> to vector<8xf32>
    %147 = vector.shape_cast %146 : vector<8xf32> to vector<8x1xf32>
    %148 = arith.mulf %144, %126 : vector<8x25xf32>
    %cst_42 = arith.constant dense<0.000000e+00> : vector<8xf32>
    %149 = vector.multi_reduction <add>, %148, %cst_42 [1] : vector<8x25xf32> to vector<8xf32>
    %150 = vector.shape_cast %149 : vector<8xf32> to vector<8x1xf32>
    %151 = vector.extract_strided_slice %47 {offsets = [0, 2], sizes = [8, 1], strides = [1, 1]} : vector<8x4xf32> to vector<8x1xf32>
    %152 = arith.mulf %151, %150 : vector<8x1xf32>
    %153 = arith.addf %152, %147 : vector<8x1xf32>
    %c2_i32 = arith.constant 2 : i32
    %154 = vector.broadcast %c2_i32 : i32 to vector<8x4xi32>
    %155 = arith.cmpi eq, %48, %154 : vector<8x4xi32>
    %cst_43 = arith.constant 0.000000e+00 : f32
    %156 = vector.shape_cast %153 : vector<8x1xf32> to vector<8x1xf32>
    %157 = vector.broadcast %156 : vector<8x1xf32> to vector<8x4xf32>
    %158 = vector.broadcast %cst_43 : f32 to vector<8x4xf32>
    %159 = arith.select %155, %157, %158 : vector<8x4xi1>, vector<8x4xf32>
    %160 = arith.addf %123, %159 : vector<8x4xf32>
    %161 = vector.extract_strided_slice %45 {offsets = [0, 75], sizes = [8, 25], strides = [1, 1]} : vector<8x300xf32> to vector<8x25xf32>
    %162 = vector.extract_strided_slice %45 {offsets = [0, 175], sizes = [8, 25], strides = [1, 1]} : vector<8x300xf32> to vector<8x25xf32>
    %163 = math.absf %162 : vector<8x25xf32>
    %164 = vector.extract_strided_slice %45 {offsets = [0, 275], sizes = [8, 25], strides = [1, 1]} : vector<8x300xf32> to vector<8x25xf32>
    %165 = math.absf %164 : vector<8x25xf32>
    %166 = math.log %165 : vector<8x25xf32>
    %167 = vector.extract_strided_slice %46 {offsets = [0, 75], sizes = [8, 25], strides = [1, 1]} : vector<8x100xf32> to vector<8x25xf32>
    %168 = arith.addf %166, %167 : vector<8x25xf32>
    %cst_44 = arith.constant dense<0xFF800000> : vector<8xf32>
    %169 = vector.multi_reduction <maximumf>, %168, %cst_44 [1] : vector<8x25xf32> to vector<8xf32>
    %170 = vector.shape_cast %169 : vector<8xf32> to vector<8x1xf32>
    %171 = tpu.iota {dimensions = array<i32: 1>} : vector<8x25xi32>
    %172 = vector.broadcast %170 : vector<8x1xf32> to vector<8x25xf32>
    %173 = arith.cmpf oge, %168, %172 : vector<8x25xf32>
    %c25_i32_45 = arith.constant 25 : i32
    %174 = vector.broadcast %c25_i32_45 : i32 to vector<8x25xi32>
    %175 = arith.select %173, %171, %174 : vector<8x25xi1>, vector<8x25xi32>
    %cst_46 = arith.constant dense<2147483647> : vector<8xi32>
    %176 = vector.multi_reduction <minsi>, %175, %cst_46 [1] : vector<8x25xi32> to vector<8xi32>
    %177 = vector.shape_cast %176 : vector<8xi32> to vector<8x1xi32>
    %178 = vector.broadcast %177 : vector<8x1xi32> to vector<8x25xi32>
    %179 = arith.cmpi eq, %171, %178 : vector<8x25xi32>
    %180 = arith.extui %179 : vector<8x25xi1> to vector<8x25xi32>
    %181 = arith.sitofp %180 : vector<8x25xi32> to vector<8x25xf32>
    %182 = arith.mulf %181, %161 : vector<8x25xf32>
    %cst_47 = arith.constant dense<0.000000e+00> : vector<8xf32>
    %183 = vector.multi_reduction <add>, %182, %cst_47 [1] : vector<8x25xf32> to vector<8xf32>
    %184 = vector.shape_cast %183 : vector<8xf32> to vector<8x1xf32>
    %185 = arith.mulf %181, %163 : vector<8x25xf32>
    %cst_48 = arith.constant dense<0.000000e+00> : vector<8xf32>
    %186 = vector.multi_reduction <add>, %185, %cst_48 [1] : vector<8x25xf32> to vector<8xf32>
    %187 = vector.shape_cast %186 : vector<8xf32> to vector<8x1xf32>
    %188 = vector.extract_strided_slice %47 {offsets = [0, 3], sizes = [8, 1], strides = [1, 1]} : vector<8x4xf32> to vector<8x1xf32>
    %189 = arith.mulf %188, %187 : vector<8x1xf32>
    %190 = arith.addf %189, %184 : vector<8x1xf32>
    %c3_i32 = arith.constant 3 : i32
    %191 = vector.broadcast %c3_i32 : i32 to vector<8x4xi32>
    %192 = arith.cmpi eq, %48, %191 : vector<8x4xi32>
    %cst_49 = arith.constant 0.000000e+00 : f32
    %193 = vector.shape_cast %190 : vector<8x1xf32> to vector<8x1xf32>
    %194 = vector.broadcast %193 : vector<8x1xf32> to vector<8x4xf32>
    %195 = vector.broadcast %cst_49 : f32 to vector<8x4xf32>
    %196 = arith.select %192, %194, %195 : vector<8x4xi1>, vector<8x4xf32>
    %197 = arith.addf %160, %196 : vector<8x4xf32>
    %c0_50 = arith.constant 0 : index
    %c0_51 = arith.constant 0 : index
    %198 = vector.load %arg12[%c0_50, %c0_51] : memref<8x4xf32, #tpu.memory_space<vmem>>, vector<8x4xf32>
    tpu.vector_store %arg12[%c0_50, %c0_51], %197 {strides = array<i32>} : memref<8x4xf32, #tpu.memory_space<vmem>>, vector<8x4xf32>,
    return
  }
  func.func @transform_0(%arg0: i32) -> (i32, i32) {
    %c0_i32 = arith.constant 0 : i32
    %c0_i32_0 = arith.constant 0 : i32
    return %arg0, %c0_i32 : i32, i32
  }
  func.func @transform_1(%arg0: i32) -> (i32, i32) {
    %c0_i32 = arith.constant 0 : i32
    %c0_i32_0 = arith.constant 0 : i32
    %c0_i32_1 = arith.constant 0 : i32
    return %c0_i32, %c0_i32_0 : i32, i32
  }
  func.func @transform_2(%arg0: i32) -> (i32, i32) {
    %c0_i32 = arith.constant 0 : i32
    %c0_i32_0 = arith.constant 0 : i32
    %c0_i32_1 = arith.constant 0 : i32
    return %c0_i32, %c0_i32_0 : i32, i32
  }
  func.func @transform_3(%arg0: i32) -> (i32, i32) {
    %c0_i32 = arith.constant 0 : i32
    %c0_i32_0 = arith.constant 0 : i32
    %c0_i32_1 = arith.constant 0 : i32
    return %c0_i32, %c0_i32_0 : i32, i32
  }
  func.func @transform_4(%arg0: i32) -> (i32, i32) {
    %c0_i32 = arith.constant 0 : i32
    %c0_i32_0 = arith.constant 0 : i32
    %c0_i32_1 = arith.constant 0 : i32
    return %c0_i32, %c0_i32_0 : i32, i32
  }
  func.func @transform_5(%arg0: i32) -> (i32, i32) {
    %c0_i32 = arith.constant 0 : i32
    %c0_i32_0 = arith.constant 0 : i32
    %c0_i32_1 = arith.constant 0 : i32
    return %c0_i32, %c0_i32_0 : i32, i32
  }
  func.func @transform_6(%arg0: i32) -> (i32, i32) {
    %c0_i32 = arith.constant 0 : i32
    %c0_i32_0 = arith.constant 0 : i32
    %c0_i32_1 = arith.constant 0 : i32
    return %c0_i32, %c0_i32_0 : i32, i32
  }
  func.func @transform_7(%arg0: i32) -> (i32, i32) {
    %c0_i32 = arith.constant 0 : i32
    %c0_i32_0 = arith.constant 0 : i32
    %c0_i32_1 = arith.constant 0 : i32
    return %c0_i32, %c0_i32_0 : i32, i32
  }
  func.func @transform_8(%arg0: i32) -> (i32, i32) {
    %c0_i32 = arith.constant 0 : i32
    %c0_i32_0 = arith.constant 0 : i32
    %c0_i32_1 = arith.constant 0 : i32
    return %c0_i32, %c0_i32_0 : i32, i32
  }
  func.func @transform_9(%arg0: i32) -> (i32, i32) {
    %c0_i32 = arith.constant 0 : i32
    %c0_i32_0 = arith.constant 0 : i32
    return %arg0, %c0_i32 : i32, i32
  }
  func.func @transform_10(%arg0: i32) -> (i32, i32) {
    %c0_i32 = arith.constant 0 : i32
    %c0_i32_0 = arith.constant 0 : i32
    return %arg0, %c0_i32 : i32, i32
  }
  func.func @transform_11(%arg0: i32) -> (i32, i32) {
    %c0_i32 = arith.constant 0 : i32
    %c0_i32_0 = arith.constant 0 : i32
    return %arg0, %c0_i32 : i32, i32
  }
}

</mosaic_0001>

<llo_original>
// kernel: backward_forward.3
$region0: #{backward_forward.3}
  #allocation0 [shape = 'u32[]', space=smem, size = 0x4, offset = 0x4, fixed_abs, tag = 'smem constant byte address 0x4 - core index']
  #allocation1 [shape = 'u32[144,128]{1,0:T(1,128)}', space=vmem, size = 0x12000, scoped, tag = 'internal scratch']
  %s0 = inlined_call_operand.vmem [shape: f32[8,3], index: 0, kind: input, shape index: {}]
  %s1 = inlined_call_operand.vmem [shape: f32[3,128], index: 1, kind: input, shape index: {}]
  %s2 = inlined_call_operand.vmem [shape: f32[1,128], index: 2, kind: input, shape index: {}]
  %s3 = inlined_call_operand.vmem [shape: bf16[128,256], index: 3, kind: input, shape index: {}]
  %s4 = inlined_call_operand.vmem [shape: f32[1,256], index: 4, kind: input, shape index: {}]
  %s5 = inlined_call_operand.vmem [shape: bf16[256,200], index: 5, kind: input, shape index: {}]
  %s6 = inlined_call_operand.vmem [shape: f32[1,200], index: 6, kind: input, shape index: {}]
  %s7 = inlined_call_operand.vmem [shape: bf16[200,300], index: 7, kind: input, shape index: {}]
  %s8 = inlined_call_operand.vmem [shape: f32[1,300], index: 8, kind: input, shape index: {}]
  %s9 = inlined_call_operand.vmem [shape: f32[8,100], index: 9, kind: input, shape index: {}]
  %s10 = inlined_call_operand.vmem [shape: f32[8,4], index: 10, kind: input, shape index: {}]
  %s11 = inlined_call_operand.vmem [shape: f32[8,4], index: 11, kind: output, shape index: {}]
  %s12 = sld [smem:[#allocation0]]
  $region54: #{backward_forward.3} parent=0
    _
  %s14 = ssub.s32 1, %s12
  %s15 = scalar_select 0, %s14, %s12
  // Predicated region
  $region2: #{backward_forward.3} parent=0 // pred_check
    _
  $region3: #{backward_forward.3} parent=0 // pred_check_branch
    %17 = sbr.rel (0) target = $region5
  $region4: #{backward_forward.3} parent=0 // pred_region
    _
  $region5: #{backward_forward.3} parent=0 // pred_fallthru
    _
  // Predicated region
  $region6: #{backward_forward.3} parent=0 // pred_check
    _
  $region7: #{backward_forward.3} parent=0 // pred_check_branch
    %19 = sbr.rel (0) target = $region9
  $region8: #{backward_forward.3} parent=0 // pred_region
    _
  $region9: #{backward_forward.3} parent=0 // pred_fallthru
    _
  // Predicated region
  $region10: #{backward_forward.3} parent=0 // pred_check
    _
  $region11: #{backward_forward.3} parent=0 // pred_check_branch
    %21 = sbr.rel (0) target = $region13
  $region12: #{backward_forward.3} parent=0 // pred_region
    _
  $region13: #{backward_forward.3} parent=0 // pred_fallthru
    _
  // Predicated region
  $region14: #{backward_forward.3} parent=0 // pred_check
    _
  $region15: #{backward_forward.3} parent=0 // pred_check_branch
    %23 = sbr.rel (0) target = $region17
  $region16: #{backward_forward.3} parent=0 // pred_region
    _
  $region17: #{backward_forward.3} parent=0 // pred_fallthru
    _
  // Predicated region
  $region18: #{backward_forward.3} parent=0 // pred_check
    _
  $region19: #{backward_forward.3} parent=0 // pred_check_branch
    %25 = sbr.rel (0) target = $region21
  $region20: #{backward_forward.3} parent=0 // pred_region
    _
  $region21: #{backward_forward.3} parent=0 // pred_fallthru
    _
  // Predicated region
  $region22: #{backward_forward.3} parent=0 // pred_check
    _
  $region23: #{backward_forward.3} parent=0 // pred_check_branch
    %27 = sbr.rel (0) target = $region25
  $region24: #{backward_forward.3} parent=0 // pred_region
    _
  $region25: #{backward_forward.3} parent=0 // pred_fallthru
    _
  // Predicated region
  $region26: #{backward_forward.3} parent=0 // pred_check
    _
  $region27: #{backward_forward.3} parent=0 // pred_check_branch
    %29 = sbr.rel (0) target = $region29
  $region28: #{backward_forward.3} parent=0 // pred_region
    _
  $region29: #{backward_forward.3} parent=0 // pred_fallthru
    _
  // Predicated region
  $region30: #{backward_forward.3} parent=0 // pred_check
    _
  $region31: #{backward_forward.3} parent=0 // pred_check_branch
    %31 = sbr.rel (0) target = $region33
  $region32: #{backward_forward.3} parent=0 // pred_region
    _
  $region33: #{backward_forward.3} parent=0 // pred_fallthru
    _
  // Predicated region
  $region34: #{backward_forward.3} parent=0 // pred_check
    _
  $region35: #{backward_forward.3} parent=0 // pred_check_branch
    %33 = sbr.rel (0) target = $region37
  $region36: #{backward_forward.3} parent=0 // pred_region
    _
  $region37: #{backward_forward.3} parent=0 // pred_fallthru
    _
  // Predicated region
  $region38: #{backward_forward.3} parent=0 // pred_check
    _
  $region39: #{backward_forward.3} parent=0 // pred_check_branch
    %35 = sbr.rel (0) target = $region41
  $region40: #{backward_forward.3} parent=0 // pred_region
    _
  $region41: #{backward_forward.3} parent=0 // pred_fallthru
    _
  // Predicated region
  $region42: #{backward_forward.3} parent=0 // pred_check
    _
  $region43: #{backward_forward.3} parent=0 // pred_check_branch
    %37 = sbr.rel (0) target = $region45
  $region44: #{backward_forward.3} parent=0 // pred_region
    _
  $region45: #{backward_forward.3} parent=0 // pred_fallthru
    _
  %v39 = vld [vmem:[%s0] sm:$0xff]
  %v40 = vld [vmem:[%s1] sm:$0x7]
  %v41 = vld [vmem:[%s2] sm:$0x1]
  %43 = vset.pattern.permute.xlu0 0
  %44 = vperm.xlu0 %43, %v39
  %v45 = vpop.permute.xlu0 %44
  %v47 = vlaneseq
  %v48 = vshrl.u32 %v47, 7
  %v49 = vsub.s32 0, %v48
  %v50 = vrot.slane %v40, %v49
  %v51 = vmul.f32 %v45, %v50
  %v53 = vlaneseq
  %v54 = vshrl.u32 %v53, 7
  %v55 = vsub.s32 0, %v54
  %v56 = vrot.slane %v41, %v55
  %v58 = vadd.f32 %v56, %v51
  %59 = vset.pattern.permute.xlu0 1
  %60 = vperm.xlu0 %59, %v39
  %v61 = vpop.permute.xlu0 %60
  %v63 = vlaneseq
  %v64 = vshrl.u32 %v63, 7
  %v65 = vsub.s32 1, %v64
  %v66 = vrot.slane %v40, %v65
  %v67 = vmul.f32 %v61, %v66
  %v68 = vadd.f32 %v58, %v67
  %69 = vset.pattern.permute.xlu0 2
  %70 = vperm.xlu0 %69, %v39
  %v71 = vpop.permute.xlu0 %70
  %v73 = vlaneseq
  %v74 = vshrl.u32 %v73, 7
  %v75 = vsub.s32 2, %v74
  %v76 = vrot.slane %v40, %v75
  %v77 = vmul.f32 %v71, %v76
  %v78 = vadd.f32 %v68, %v77
  %v79 = vmax.f32 %v78, 0.0
  %v80 = vpack.c.bf16 %v79, %v79
  %v81 = vld [vmem:[%s3] sm:$0xff]
  %v82 = vld [vmem:[%s3 + $0x8] sm:$0xff]
  %v83 = vld [vmem:[%s3 + $0x10] sm:$0xff]
  %v84 = vld [vmem:[%s3 + $0x18] sm:$0xff]
  %v85 = vld [vmem:[%s3 + $0x20] sm:$0xff]
  %v86 = vld [vmem:[%s3 + $0x28] sm:$0xff]
  %v87 = vld [vmem:[%s3 + $0x30] sm:$0xff]
  %v88 = vld [vmem:[%s3 + $0x38] sm:$0xff]
  %v89 = vld [vmem:[%s3 + $0x40] sm:$0xff]
  %v90 = vld [vmem:[%s3 + $0x48] sm:$0xff]
  %v91 = vld [vmem:[%s3 + $0x50] sm:$0xff]
  %v92 = vld [vmem:[%s3 + $0x58] sm:$0xff]
  %v93 = vld [vmem:[%s3 + $0x60] sm:$0xff]
  %v94 = vld [vmem:[%s3 + $0x68] sm:$0xff]
  %v95 = vld [vmem:[%s3 + $0x70] sm:$0xff]
  %v96 = vld [vmem:[%s3 + $0x78] sm:$0xff]
  %v97 = vld [vmem:[%s4] sm:$0x3]
  %v99 = vlaneseq
  %v100 = vshrl.u32 %v99, 7
  %v101 = vsub.s32 0, %v100
  %v102 = vrot.slane %v97, %v101
  %v103 = vlaneseq
  %v104 = vshrl.u32 %v103, 7
  %v105 = vsub.s32 1, %v104
  %v106 = vrot.slane %v97, %v105
  %v125 = vunpack.c.l.b16 %v81
  %v126 = vunpack.c.h.b16 %v81
  %v127 = vunpack.c.l.b16 %v82
  %v128 = vunpack.c.h.b16 %v82
  %v129 = vunpack.c.l.b16 %v83
  %v130 = vunpack.c.h.b16 %v83
  %v131 = vunpack.c.l.b16 %v84
  %v132 = vunpack.c.h.b16 %v84
  %v133 = vunpack.c.l.b16 %v85
  %v134 = vunpack.c.h.b16 %v85
  %v135 = vunpack.c.l.b16 %v86
  %v136 = vunpack.c.h.b16 %v86
  %v137 = vunpack.c.l.b16 %v87
  %v138 = vunpack.c.h.b16 %v87
  %v139 = vunpack.c.l.b16 %v88
  %v140 = vunpack.c.h.b16 %v88
  %v141 = vunpack.c.l.b16 %v89
  %v142 = vunpack.c.h.b16 %v89
  %v143 = vunpack.c.l.b16 %v90
  %v144 = vunpack.c.h.b16 %v90
  %v145 = vunpack.c.l.b16 %v91
  %v146 = vunpack.c.h.b16 %v91
  %v147 = vunpack.c.l.b16 %v92
  %v148 = vunpack.c.h.b16 %v92
  %v149 = vunpack.c.l.b16 %v93
  %v150 = vunpack.c.h.b16 %v93
  %v151 = vunpack.c.l.b16 %v94
  %v152 = vunpack.c.h.b16 %v94
  %v153 = vunpack.c.l.b16 %v95
  %v154 = vunpack.c.h.b16 %v95
  %v155 = vunpack.c.l.b16 %v96
  %v156 = vunpack.c.h.b16 %v96
  %v157 = vpack.c.b16 %v127, %v125
  %v158 = vpack.c.b16 %v128, %v126
  %v159 = vpack.c.b16 %v131, %v129
  %v160 = vpack.c.b16 %v132, %v130
  %v161 = vpack.c.b16 %v135, %v133
  %v162 = vpack.c.b16 %v136, %v134
  %v163 = vpack.c.b16 %v139, %v137
  %v164 = vpack.c.b16 %v140, %v138
  %v165 = vpack.c.b16 %v143, %v141
  %v166 = vpack.c.b16 %v144, %v142
  %v167 = vpack.c.b16 %v147, %v145
  %v168 = vpack.c.b16 %v148, %v146
  %v169 = vpack.c.b16 %v151, %v149
  %v170 = vpack.c.b16 %v152, %v150
  %v171 = vpack.c.b16 %v155, %v153
  %v172 = vpack.c.b16 %v156, %v154
  %189 = vmatprep.subr.bf16.mxu0 %v158
  %190 = vmatpush1.bf16.msra.mxu0 %v157
  %191 = vmatprep.subr.bf16.mxu0 %v160
  %192 = vmatpush1.bf16.msra.mxu0 %v159
  %193 = vmatprep.subr.bf16.mxu0 %v162
  %194 = vmatpush1.bf16.msra.mxu0 %v161
  %195 = vmatprep.subr.bf16.mxu0 %v164
  %196 = vmatpush1.bf16.msra.mxu0 %v163
  %197 = vmatprep.subr.bf16.mxu0 %v166
  %198 = vmatpush1.bf16.msra.mxu0 %v165
  %199 = vmatprep.subr.bf16.mxu0 %v168
  %200 = vmatpush1.bf16.msra.mxu0 %v167
  %201 = vmatprep.subr.bf16.mxu0 %v170
  %202 = vmatpush1.bf16.msra.mxu0 %v169
  %203 = vmatprep.subr.bf16.mxu0 %v172
  %204 = vmatpush1.bf16.msra.mxu0 %v171
  %205 = vmatprep.subr.bf16.mxu0 0
  %206 = vmatpush1.bf16.msra.mxu0 0
  %207 = vmatprep.subr.bf16.mxu0 0
  %208 = vmatpush1.bf16.msra.mxu0 0
  %209 = vmatprep.subr.bf16.mxu0 0
  %210 = vmatpush1.bf16.msra.mxu0 0
  %211 = vmatprep.subr.bf16.mxu0 0
  %212 = vmatpush1.bf16.msra.mxu0 0
  %213 = vmatprep.subr.bf16.mxu0 0
  %214 = vmatpush1.bf16.msra.mxu0 0
  %215 = vmatprep.subr.bf16.mxu0 0
  %216 = vmatpush1.bf16.msra.mxu0 0
  %217 = vmatprep.subr.bf16.mxu0 0
  %218 = vmatpush1.bf16.msra.mxu0 0
  %219 = vmatprep.subr.bf16.mxu0 0
  %220 = vmatpush1.bf16.msra.mxu0 0
  %221 = vmatprep.mubr.bf16.mxu0 0
  %222 = vmatmul.mubr.bf16.gmra.mrb[0].mxu0 %v80
  %v223 = vpop.f32.mrb[0].mxu0
  %v224 = vadd.f32 %v102, %v223
  %v225 = vpop.f32.mrb[0].mxu0
  %v226 = vadd.f32 %v106, %v225
  %v227 = vpop.f32.mrb[0].mxu0
  %v228 = vpop.f32.mrb[0].mxu0
  %229 = vdwg.mxu0
  %v230 = vmax.f32 %v224, 0.0
  %v231 = vmax.f32 %v226, 0.0
  %v232 = vpack.c.bf16 %v230, %v230
  %v233 = vpack.c.bf16 %v231, %v231
  %v234 = vld [vmem:[%s5] sm:$0xff]
  %v235 = vld [vmem:[%s5 + $0x8] sm:$0xff]
  %v236 = vld [vmem:[%s5 + $0x10] sm:$0xff]
  %v237 = vld [vmem:[%s5 + $0x18] sm:$0xff]
  %v238 = vld [vmem:[%s5 + $0x20] sm:$0xff]
  %v239 = vld [vmem:[%s5 + $0x28] sm:$0xff]
  %v240 = vld [vmem:[%s5 + $0x30] sm:$0xff]
  %v241 = vld [vmem:[%s5 + $0x38] sm:$0xff]
  %v242 = vld [vmem:[%s5 + $0x40] sm:$0xff]
  %v243 = vld [vmem:[%s5 + $0x48] sm:$0xff]
  %v244 = vld [vmem:[%s5 + $0x50] sm:$0xff]
  %v245 = vld [vmem:[%s5 + $0x58] sm:$0xff]
  %v246 = vld [vmem:[%s5 + $0x60] sm:$0xff]
  %v247 = vld [vmem:[%s5 + $0x68] sm:$0xff]
  %v248 = vld [vmem:[%s5 + $0x70] sm:$0xff]
  %v249 = vld [vmem:[%s5 + $0x78] sm:$0xff]
  %v250 = vld [vmem:[%s5 + $0x80] sm:$0xff]
  %v251 = vld [vmem:[%s5 + $0x88] sm:$0xff]
  %v252 = vld [vmem:[%s5 + $0x90] sm:$0xff]
  %v253 = vld [vmem:[%s5 + $0x98] sm:$0xff]
  %v254 = vld [vmem:[%s5 + $0xa0] sm:$0xff]
  %v255 = vld [vmem:[%s5 + $0xa8] sm:$0xff]
  %v256 = vld [vmem:[%s5 + $0xb0] sm:$0xff]
  %v257 = vld [vmem:[%s5 + $0xb8] sm:$0xff]
  %v258 = vld [vmem:[%s5 + $0xc0] sm:$0xff]
  %v259 = vld [vmem:[%s5 + $0xc8] sm:$0xff]
  %v260 = vld [vmem:[%s5 + $0xd0] sm:$0xff]
  %v261 = vld [vmem:[%s5 + $0xd8] sm:$0xff]
  %v262 = vld [vmem:[%s5 + $0xe0] sm:$0xff]
  %v263 = vld [vmem:[%s5 + $0xe8] sm:$0xff]
  %v264 = vld [vmem:[%s5 + $0xf0] sm:$0xff]
  %v265 = vld [vmem:[%s5 + $0xf8] sm:$0xff]
  %v266 = vld [vmem:[%s6] sm:$0x3]
  %v268 = vlaneseq
  %v269 = vshrl.u32 %v268, 7
  %v270 = vsub.s32 0, %v269
  %v271 = vrot.slane %v266, %v270
  %v272 = vlaneseq
  %v273 = vshrl.u32 %v272, 7
  %v274 = vsub.s32 1, %v273
  %v275 = vrot.slane %v266, %v274
  %v310 = vunpack.c.l.b16 %v234
  %v311 = vunpack.c.h.b16 %v234
  %v312 = vunpack.c.l.b16 %v235
  %v313 = vunpack.c.h.b16 %v235
  %v314 = vunpack.c.l.b16 %v236
  %v315 = vunpack.c.h.b16 %v236
  %v316 = vunpack.c.l.b16 %v237
  %v317 = vunpack.c.h.b16 %v237
  %v318 = vunpack.c.l.b16 %v238
  %v319 = vunpack.c.h.b16 %v238
  %v320 = vunpack.c.l.b16 %v239
  %v321 = vunpack.c.h.b16 %v239
  %v322 = vunpack.c.l.b16 %v240
  %v323 = vunpack.c.h.b16 %v240
  %v324 = vunpack.c.l.b16 %v241
  %v325 = vunpack.c.h.b16 %v241
  %v326 = vunpack.c.l.b16 %v242
  %v327 = vunpack.c.h.b16 %v242
  %v328 = vunpack.c.l.b16 %v243
  %v329 = vunpack.c.h.b16 %v243
  %v330 = vunpack.c.l.b16 %v244
  %v331 = vunpack.c.h.b16 %v244
  %v332 = vunpack.c.l.b16 %v245
  %v333 = vunpack.c.h.b16 %v245
  %v334 = vunpack.c.l.b16 %v246
  %v335 = vunpack.c.h.b16 %v246
  %v336 = vunpack.c.l.b16 %v247
  %v337 = vunpack.c.h.b16 %v247
  %v338 = vunpack.c.l.b16 %v248
  %v339 = vunpack.c.h.b16 %v248
  %v340 = vunpack.c.l.b16 %v249
  %v341 = vunpack.c.h.b16 %v249
  %v342 = vunpack.c.l.b16 %v250
  %v343 = vunpack.c.h.b16 %v250
  %v344 = vunpack.c.l.b16 %v251
  %v345 = vunpack.c.h.b16 %v251
  %v346 = vunpack.c.l.b16 %v252
  %v347 = vunpack.c.h.b16 %v252
  %v348 = vunpack.c.l.b16 %v253
  %v349 = vunpack.c.h.b16 %v253
  %v350 = vunpack.c.l.b16 %v254
  %v351 = vunpack.c.h.b16 %v254
  %v352 = vunpack.c.l.b16 %v255
  %v353 = vunpack.c.h.b16 %v255
  %v354 = vunpack.c.l.b16 %v256
  %v355 = vunpack.c.h.b16 %v256
  %v356 = vunpack.c.l.b16 %v257
  %v357 = vunpack.c.h.b16 %v257
  %v358 = vunpack.c.l.b16 %v258
  %v359 = vunpack.c.h.b16 %v258
  %v360 = vunpack.c.l.b16 %v259
  %v361 = vunpack.c.h.b16 %v259
  %v362 = vunpack.c.l.b16 %v260
  %v363 = vunpack.c.h.b16 %v260
  %v364 = vunpack.c.l.b16 %v261
  %v365 = vunpack.c.h.b16 %v261
  %v366 = vunpack.c.l.b16 %v262
  %v367 = vunpack.c.h.b16 %v262
  %v368 = vunpack.c.l.b16 %v263
  %v369 = vunpack.c.h.b16 %v263
  %v370 = vunpack.c.l.b16 %v264
  %v371 = vunpack.c.h.b16 %v264
  %v372 = vunpack.c.l.b16 %v265
  %v373 = vunpack.c.h.b16 %v265
  %v374 = vpack.c.b16 %v312, %v310
  %v375 = vpack.c.b16 %v313, %v311
  %v376 = vpack.c.b16 %v316, %v314
  %v377 = vpack.c.b16 %v317, %v315
  %v378 = vpack.c.b16 %v320, %v318
  %v379 = vpack.c.b16 %v321, %v319
  %v380 = vpack.c.b16 %v324, %v322
  %v381 = vpack.c.b16 %v325, %v323
  %v382 = vpack.c.b16 %v328, %v326
  %v383 = vpack.c.b16 %v329, %v327
  %v384 = vpack.c.b16 %v332, %v330
  %v385 = vpack.c.b16 %v333, %v331
  %v386 = vpack.c.b16 %v336, %v334
  %v387 = vpack.c.b16 %v337, %v335
  %v388 = vpack.c.b16 %v340, %v338
  %v389 = vpack.c.b16 %v341, %v339
  %v390 = vpack.c.b16 %v344, %v342
  %v391 = vpack.c.b16 %v345, %v343
  %v392 = vpack.c.b16 %v348, %v346
  %v393 = vpack.c.b16 %v349, %v347
  %v394 = vpack.c.b16 %v352, %v350
  %v395 = vpack.c.b16 %v353, %v351
  %v396 = vpack.c.b16 %v356, %v354
  %v397 = vpack.c.b16 %v357, %v355
  %v398 = vpack.c.b16 %v360, %v358
  %v399 = vpack.c.b16 %v361, %v359
  %v400 = vpack.c.b16 %v364, %v362
  %v401 = vpack.c.b16 %v365, %v363
  %v402 = vpack.c.b16 %v368, %v366
  %v403 = vpack.c.b16 %v369, %v367
  %v404 = vpack.c.b16 %v372, %v370
  %v405 = vpack.c.b16 %v373, %v371
  %438 = vmatprep.subr.bf16.mxu0 %v375
  %439 = vmatpush1.bf16.msra.mxu0 %v374
  %440 = vmatprep.subr.bf16.mxu0 %v377
  %441 = vmatpush1.bf16.msra.mxu0 %v376
  %442 = vmatprep.subr.bf16.mxu0 %v379
  %443 = vmatpush1.bf16.msra.mxu0 %v378
  %444 = vmatprep.subr.bf16.mxu0 %v381
  %445 = vmatpush1.bf16.msra.mxu0 %v380
  %446 = vmatprep.subr.bf16.mxu0 %v383
  %447 = vmatpush1.bf16.msra.mxu0 %v382
  %448 = vmatprep.subr.bf16.mxu0 %v385
  %449 = vmatpush1.bf16.msra.mxu0 %v384
  %450 = vmatprep.subr.bf16.mxu0 %v387
  %451 = vmatpush1.bf16.msra.mxu0 %v386
  %452 = vmatprep.subr.bf16.mxu0 %v389
  %453 = vmatpush1.bf16.msra.mxu0 %v388
  %454 = vmatprep.subr.bf16.mxu0 %v391
  %455 = vmatpush1.bf16.msra.mxu0 %v390
  %456 = vmatprep.subr.bf16.mxu0 %v393
  %457 = vmatpush1.bf16.msra.mxu0 %v392
  %458 = vmatprep.subr.bf16.mxu0 %v395
  %459 = vmatpush1.bf16.msra.mxu0 %v394
  %460 = vmatprep.subr.bf16.mxu0 %v397
  %461 = vmatpush1.bf16.msra.mxu0 %v396
  %462 = vmatprep.subr.bf16.mxu0 %v399
  %463 = vmatpush1.bf16.msra.mxu0 %v398
  %464 = vmatprep.subr.bf16.mxu0 %v401
  %465 = vmatpush1.bf16.msra.mxu0 %v400
  %466 = vmatprep.subr.bf16.mxu0 %v403
  %467 = vmatpush1.bf16.msra.mxu0 %v402
  %468 = vmatprep.subr.bf16.mxu0 %v405
  %469 = vmatpush1.bf16.msra.mxu0 %v404
  %470 = vmatprep.mubr.bf16.mxu0 %v233
  %471 = vmatmul.mubr.bf16.gmra.mrb[0].mxu0 %v232
  %v472 = vpop.f32.mrb[0].mxu0
  %v473 = vadd.f32 %v271, %v472
  %v474 = vpop.f32.mrb[0].mxu0
  %v475 = vadd.f32 %v275, %v474
  %v476 = vpop.f32.mrb[0].mxu0
  %v477 = vpop.f32.mrb[0].mxu0
  %478 = vdwg.mxu0
  %v479 = vmax.f32 %v473, 0.0
  %v480 = vmax.f32 %v475, 0.0
  %v481 = vpack.c.bf16 %v479, %v479
  %v482 = vpack.c.bf16 %v480, %v480
  %v483 = vld [vmem:[%s7] sm:$0xff]
  %v484 = vld [vmem:[%s7 + $0x8] sm:$0xf]
  %v485 = vld [vmem:[%s7 + $0xc] sm:$0xff]
  %v486 = vld [vmem:[%s7 + $0x14] sm:$0xf]
  %v487 = vld [vmem:[%s7 + $0x18] sm:$0xff]
  %v488 = vld [vmem:[%s7 + $0x20] sm:$0xf]
  %v489 = vld [vmem:[%s7 + $0x24] sm:$0xff]
  %v490 = vld [vmem:[%s7 + $0x2c] sm:$0xf]
  %v491 = vld [vmem:[%s7 + $0x30] sm:$0xff]
  %v492 = vld [vmem:[%s7 + $0x38] sm:$0xf]
  %v493 = vld [vmem:[%s7 + $0x3c] sm:$0xff]
  %v494 = vld [vmem:[%s7 + $0x44] sm:$0xf]
  %v495 = vld [vmem:[%s7 + $0x48] sm:$0xff]
  %v496 = vld [vmem:[%s7 + $0x50] sm:$0xf]
  %v497 = vld [vmem:[%s7 + $0x54] sm:$0xff]
  %v498 = vld [vmem:[%s7 + $0x5c] sm:$0xf]
  %v499 = vld [vmem:[%s7 + $0x60] sm:$0xff]
  %v500 = vld [vmem:[%s7 + $0x68] sm:$0xf]
  %v501 = vld [vmem:[%s7 + $0x6c] sm:$0xff]
  %v502 = vld [vmem:[%s7 + $0x74] sm:$0xf]
  %v503 = vld [vmem:[%s7 + $0x78] sm:$0xff]
  %v504 = vld [vmem:[%s7 + $0x80] sm:$0xf]
  %v505 = vld [vmem:[%s7 + $0x84] sm:$0xff]
  %v506 = vld [vmem:[%s7 + $0x8c] sm:$0xf]
  %v507 = vld [vmem:[%s7 + $0x90] sm:$0xff]
  %v508 = vld [vmem:[%s7 + $0x98] sm:$0xf]
  %v509 = vld [vmem:[%s7 + $0x9c] sm:$0xff]
  %v510 = vld [vmem:[%s7 + $0xa4] sm:$0xf]
  %v511 = vld [vmem:[%s7 + $0xa8] sm:$0xff]
  %v512 = vld [vmem:[%s7 + $0xb0] sm:$0xf]
  %v513 = vld [vmem:[%s7 + $0xb4] sm:$0xff]
  %v514 = vld [vmem:[%s7 + $0xbc] sm:$0xf]
  %v515 = vld [vmem:[%s7 + $0xc0] sm:$0xff]
  %v516 = vld [vmem:[%s7 + $0xc8] sm:$0xf]
  %v517 = vld [vmem:[%s7 + $0xcc] sm:$0xff]
  %v518 = vld [vmem:[%s7 + $0xd4] sm:$0xf]
  %v519 = vld [vmem:[%s7 + $0xd8] sm:$0xff]
  %v520 = vld [vmem:[%s7 + $0xe0] sm:$0xf]
  %v521 = vld [vmem:[%s7 + $0xe4] sm:$0xff]
  %v522 = vld [vmem:[%s7 + $0xec] sm:$0xf]
  %v523 = vld [vmem:[%s7 + $0xf0] sm:$0xff]
  %v524 = vld [vmem:[%s7 + $0xf8] sm:$0xf]
  %v525 = vld [vmem:[%s7 + $0xfc] sm:$0xff]
  %v526 = vld [vmem:[%s7 + $0x104] sm:$0xf]
  %v527 = vld [vmem:[%s7 + $0x108] sm:$0xff]
  %v528 = vld [vmem:[%s7 + $0x110] sm:$0xf]
  %v529 = vld [vmem:[%s7 + $0x114] sm:$0xff]
  %v530 = vld [vmem:[%s7 + $0x11c] sm:$0xf]
  %v531 = vld [vmem:[%s7 + $0x120] sm:$0xff]
  %v532 = vld [vmem:[%s7 + $0x128] sm:$0xf]
  %v533 = vld [vmem:[%s8] sm:$0x7]
  %v535 = vlaneseq
  %v536 = vshrl.u32 %v535, 7
  %v537 = vsub.s32 0, %v536
  %v538 = vrot.slane %v533, %v537
  %v539 = vlaneseq
  %v540 = vshrl.u32 %v539, 7
  %v541 = vsub.s32 1, %v540
  %v542 = vrot.slane %v533, %v541
  %v543 = vlaneseq
  %v544 = vshrl.u32 %v543, 7
  %v545 = vsub.s32 2, %v544
  %v546 = vrot.slane %v533, %v545
  %v600 = vunpack.c.l.b16 %v483
  %v601 = vunpack.c.h.b16 %v483
  %v602 = vunpack.c.l.b16 %v484
  %v603 = vunpack.c.l.b16 %v485
  %v604 = vunpack.c.h.b16 %v485
  %v605 = vunpack.c.l.b16 %v486
  %v606 = vunpack.c.l.b16 %v487
  %v607 = vunpack.c.h.b16 %v487
  %v608 = vunpack.c.l.b16 %v488
  %v609 = vunpack.c.l.b16 %v489
  %v610 = vunpack.c.h.b16 %v489
  %v611 = vunpack.c.l.b16 %v490
  %v612 = vunpack.c.l.b16 %v491
  %v613 = vunpack.c.h.b16 %v491
  %v614 = vunpack.c.l.b16 %v492
  %v615 = vunpack.c.l.b16 %v493
  %v616 = vunpack.c.h.b16 %v493
  %v617 = vunpack.c.l.b16 %v494
  %v618 = vunpack.c.l.b16 %v495
  %v619 = vunpack.c.h.b16 %v495
  %v620 = vunpack.c.l.b16 %v496
  %v621 = vunpack.c.l.b16 %v497
  %v622 = vunpack.c.h.b16 %v497
  %v623 = vunpack.c.l.b16 %v498
  %v624 = vunpack.c.l.b16 %v499
  %v625 = vunpack.c.h.b16 %v499
  %v626 = vunpack.c.l.b16 %v500
  %v627 = vunpack.c.l.b16 %v501
  %v628 = vunpack.c.h.b16 %v501
  %v629 = vunpack.c.l.b16 %v502
  %v630 = vunpack.c.l.b16 %v503
  %v631 = vunpack.c.h.b16 %v503
  %v632 = vunpack.c.l.b16 %v504
  %v633 = vunpack.c.l.b16 %v505
  %v634 = vunpack.c.h.b16 %v505
  %v635 = vunpack.c.l.b16 %v506
  %v636 = vunpack.c.l.b16 %v507
  %v637 = vunpack.c.h.b16 %v507
  %v638 = vunpack.c.l.b16 %v508
  %v639 = vunpack.c.l.b16 %v509
  %v640 = vunpack.c.h.b16 %v509
  %v641 = vunpack.c.l.b16 %v510
  %v642 = vunpack.c.l.b16 %v511
  %v643 = vunpack.c.h.b16 %v511
  %v644 = vunpack.c.l.b16 %v512
  %v645 = vunpack.c.l.b16 %v513
  %v646 = vunpack.c.h.b16 %v513
  %v647 = vunpack.c.l.b16 %v514
  %v648 = vunpack.c.l.b16 %v515
  %v649 = vunpack.c.h.b16 %v515
  %v650 = vunpack.c.l.b16 %v516
  %v651 = vunpack.c.l.b16 %v517
  %v652 = vunpack.c.h.b16 %v517
  %v653 = vunpack.c.l.b16 %v518
  %v654 = vunpack.c.l.b16 %v519
  %v655 = vunpack.c.h.b16 %v519
  %v656 = vunpack.c.l.b16 %v520
  %v657 = vunpack.c.l.b16 %v521
  %v658 = vunpack.c.h.b16 %v521
  %v659 = vunpack.c.l.b16 %v522
  %v660 = vunpack.c.l.b16 %v523
  %v661 = vunpack.c.h.b16 %v523
  %v662 = vunpack.c.l.b16 %v524
  %v663 = vunpack.c.l.b16 %v525
  %v664 = vunpack.c.h.b16 %v525
  %v665 = vunpack.c.l.b16 %v526
  %v666 = vunpack.c.l.b16 %v527
  %v667 = vunpack.c.h.b16 %v527
  %v668 = vunpack.c.l.b16 %v528
  %v669 = vunpack.c.l.b16 %v529
  %v670 = vunpack.c.h.b16 %v529
  %v671 = vunpack.c.l.b16 %v530
  %v672 = vunpack.c.l.b16 %v531
  %v673 = vunpack.c.h.b16 %v531
  %v674 = vunpack.c.l.b16 %v532
  %v675 = vpack.c.b16 %v603, %v600
  %v676 = vpack.c.b16 %v604, %v601
  %v677 = vpack.c.b16 %v605, %v602
  %v678 = vpack.c.b16 %v609, %v606
  %v679 = vpack.c.b16 %v610, %v607
  %v680 = vpack.c.b16 %v611, %v608
  %v681 = vpack.c.b16 %v615, %v612
  %v682 = vpack.c.b16 %v616, %v613
  %v683 = vpack.c.b16 %v617, %v614
  %v684 = vpack.c.b16 %v621, %v618
  %v685 = vpack.c.b16 %v622, %v619
  %v686 = vpack.c.b16 %v623, %v620
  %v687 = vpack.c.b16 %v627, %v624
  %v688 = vpack.c.b16 %v628, %v625
  %v689 = vpack.c.b16 %v629, %v626
  %v690 = vpack.c.b16 %v633, %v630
  %v691 = vpack.c.b16 %v634, %v631
  %v692 = vpack.c.b16 %v635, %v632
  %v693 = vpack.c.b16 %v639, %v636
  %v694 = vpack.c.b16 %v640, %v637
  %v695 = vpack.c.b16 %v641, %v638
  %v696 = vpack.c.b16 %v645, %v642
  %v697 = vpack.c.b16 %v646, %v643
  %v698 = vpack.c.b16 %v647, %v644
  %v699 = vpack.c.b16 %v651, %v648
  %v700 = vpack.c.b16 %v652, %v649
  %v701 = vpack.c.b16 %v653, %v650
  %v702 = vpack.c.b16 %v657, %v654
  %v703 = vpack.c.b16 %v658, %v655
  %v704 = vpack.c.b16 %v659, %v656
  %v705 = vpack.c.b16 %v663, %v660
  %v706 = vpack.c.b16 %v664, %v661
  %v707 = vpack.c.b16 %v665, %v662
  %v708 = vpack.c.b16 %v669, %v666
  %v709 = vpack.c.b16 %v670, %v667
  %v710 = vpack.c.b16 %v671, %v668
  %v711 = vpack.c.b16 %v672, %v672
  %v712 = vpack.c.b16 %v673, %v673
  %v713 = vpack.c.b16 %v674, %v674
  %vm750 = vcmask 588800
  %v752 = vsel %vm750, %v482, 0
  %vm754 = vcmask 1043456
  %v756 = vsel %vm754, %v711, 0
  %v759 = vsel %vm754, %v712, 0
  %v762 = vsel %vm754, %v713, 0
  %764 = vmatprep.subr.bf16.mxu0 %v676
  %765 = vmatpush1.bf16.msra.mxu0 %v675
  %766 = vmatprep.subr.bf16.mxu0 %v679
  %767 = vmatpush1.bf16.msra.mxu0 %v678
  %768 = vmatprep.subr.bf16.mxu0 %v682
  %769 = vmatpush1.bf16.msra.mxu0 %v681
  %770 = vmatprep.subr.bf16.mxu0 %v685
  %771 = vmatpush1.bf16.msra.mxu0 %v684
  %772 = vmatprep.subr.bf16.mxu0 %v688
  %773 = vmatpush1.bf16.msra.mxu0 %v687
  %774 = vmatprep.subr.bf16.mxu0 %v691
  %775 = vmatpush1.bf16.msra.mxu0 %v690
  %776 = vmatprep.subr.bf16.mxu0 %v694
  %777 = vmatpush1.bf16.msra.mxu0 %v693
  %778 = vmatprep.subr.bf16.mxu0 %v697
  %779 = vmatpush1.bf16.msra.mxu0 %v696
  %780 = vmatprep.subr.bf16.mxu0 %v700
  %781 = vmatpush1.bf16.msra.mxu0 %v699
  %782 = vmatprep.subr.bf16.mxu0 %v703
  %783 = vmatpush1.bf16.msra.mxu0 %v702
  %784 = vmatprep.subr.bf16.mxu0 %v706
  %785 = vmatpush1.bf16.msra.mxu0 %v705
  %786 = vmatprep.subr.bf16.mxu0 %v709
  %787 = vmatpush1.bf16.msra.mxu0 %v708
  %788 = vmatprep.subr.bf16.mxu0 %v759
  %789 = vmatpush1.bf16.msra.mxu0 %v756
  %790 = vmatprep.subr.bf16.mxu0 0
  %791 = vmatpush1.bf16.msra.mxu0 0
  %792 = vmatprep.subr.bf16.mxu0 0
  %793 = vmatpush1.bf16.msra.mxu0 0
  %794 = vmatprep.subr.bf16.mxu0 0
  %795 = vmatpush1.bf16.msra.mxu0 0
  %796 = vmatprep.mubr.bf16.mxu0 %v752
  %797 = vmatmul.mubr.bf16.gmra.mrb[0].mxu0 %v481
  %v798 = vpop.f32.mrb[0].mxu0
  %v799 = vadd.f32 %v538, %v798
  %v800 = vpop.f32.mrb[0].mxu0
  %v801 = vadd.f32 %v542, %v800
  %v802 = vpop.f32.mrb[0].mxu0
  %v803 = vpop.f32.mrb[0].mxu0
  %804 = vdwg.mxu0
  %805 = vmatprep.subr.bf16.mxu0 0
  %806 = vmatpush1.bf16.msra.mxu0 %v677
  %807 = vmatprep.subr.bf16.mxu0 0
  %808 = vmatpush1.bf16.msra.mxu0 %v680
  %809 = vmatprep.subr.bf16.mxu0 0
  %810 = vmatpush1.bf16.msra.mxu0 %v683
  %811 = vmatprep.subr.bf16.mxu0 0
  %812 = vmatpush1.bf16.msra.mxu0 %v686
  %813 = vmatprep.subr.bf16.mxu0 0
  %814 = vmatpush1.bf16.msra.mxu0 %v689
  %815 = vmatprep.subr.bf16.mxu0 0
  %816 = vmatpush1.bf16.msra.mxu0 %v692
  %817 = vmatprep.subr.bf16.mxu0 0
  %818 = vmatpush1.bf16.msra.mxu0 %v695
  %819 = vmatprep.subr.bf16.mxu0 0
  %820 = vmatpush1.bf16.msra.mxu0 %v698
  %821 = vmatprep.subr.bf16.mxu0 0
  %822 = vmatpush1.bf16.msra.mxu0 %v701
  %823 = vmatprep.subr.bf16.mxu0 0
  %824 = vmatpush1.bf16.msra.mxu0 %v704
  %825 = vmatprep.subr.bf16.mxu0 0
  %826 = vmatpush1.bf16.msra.mxu0 %v707
  %827 = vmatprep.subr.bf16.mxu0 0
  %828 = vmatpush1.bf16.msra.mxu0 %v710
  %829 = vmatprep.subr.bf16.mxu0 0
  %830 = vmatpush1.bf16.msra.mxu0 %v762
  %831 = vmatprep.subr.bf16.mxu0 0
  %832 = vmatpush1.bf16.msra.mxu0 0
  %833 = vmatprep.subr.bf16.mxu0 0
  %834 = vmatpush1.bf16.msra.mxu0 0
  %835 = vmatprep.subr.bf16.mxu0 0
  %836 = vmatpush1.bf16.msra.mxu0 0
  %837 = vmatprep.mubr.bf16.mxu0 %v752
  %838 = vmatmul.mubr.bf16.gmra.mrb[0].mxu0 %v481
  %v839 = vpop.f32.mrb[0].mxu0
  %v840 = vadd.f32 %v546, %v839
  %v841 = vpop.f32.mrb[0].mxu0
  %v842 = vpop.f32.mrb[0].mxu0
  %v843 = vpop.f32.mrb[0].mxu0
  %844 = vdwg.mxu0
  %v845 = vld [vmem:[%s9] sm:$0xff]
  %v846 = vld [vmem:[%s10] sm:$0xff]
  %v847 = vlaneseq
  %v848 = vand.u32 %v847, 127
  %v849 = vand.u32 2147483647, %v799
  %v850 = vand.u32 2147483647, %v801
  %v851 = vlog2.pop %v850
  %v852 = vmul.f32 %v851, 0.6931472
  %854 = vrot.lane.b32.xlu0 %v845, 72
  %v855 = vpop.permute.xlu0 %854
  %v857 = vadd.f32 %v852, %v855
  %vm858 = vcmask 794176
  %v859 = vsel %vm858, %v857, -inf
  %860 = vmax.xlane.f32.xlu0 %v859
  %v861 = vpop.xlane.xlu0 %860
  %vm862 = vcmp.ge.f32.partialorder %v857, %v861
  %863 = vrot.lane.b32.xlu0 %v848, 72
  %v864 = vpop.permute.xlu0 %863
  %v865 = vsel %vm862, %v864, 25
  %v866 = vsel %vm858, %v865, 2147483647
  %v867 = vand.u32 %v866, 65535
  %v868 = vshra.s32 %v866, 16
  %v869 = vcvt.s32.f32 %v867
  %v870 = vcvt.s32.f32 %v868
  %871 = vmin.xlane.f32.xlu0 %v870
  %v872 = vpop.xlane.xlu0 %871
  %vm873 = vcmp.eq.f32.partialorder %v870, %v872
  %v874 = vsel %vm873, %v869, inf
  %875 = vmin.xlane.f32.xlu0 %v874
  %v876 = vpop.xlane.xlu0 %875
  %v877 = vcvt.f32.s32 %v876
  %v878 = vcvt.f32.s32 %v872
  %v879 = vshll.u32 %v878, 16
  %v880 = vadd.s32 %v879, %v877
  %vm881 = vcmp.eq.s32.totalorder %v848, %v880
  %v882 = vsel %vm881, 1, 0
  %v883 = vcvt.s32.f32 %v882
  %v884 = vmul.f32 %v883, %v799
  %vm885 = vcmask 203776
  %v886 = vsel %vm885, %v884, 0.0
  %887 = vadd.xlane.f32.xlu0 %v886
  %v888 = vpop.xlane.xlu0 %887
  %890 = vrot.lane.b32.xlu0 %v849, 28
  %v891 = vpop.permute.xlu0 %890
  %v893 = vmul.f32 %v883, %v891
  %v894 = vsel %vm885, %v893, 0.0
  %895 = vadd.xlane.f32.xlu0 %v894
  %v896 = vpop.xlane.xlu0 %895
  %v897 = vmul.f32 %v846, %v896
  %v898 = vadd.f32 %v897, %v888
  %vm899 = vcmp.eq.s32.totalorder %v848, 0
  %901 = vset.pattern.permute.xlu0 0
  %902 = vperm.xlu0 %901, %v898
  %v903 = vpop.permute.xlu0 %902
  %v905 = vsel %vm899, %v903, 0.0
  %v906 = vadd.f32 %v905, 0.0
  %vm907 = vcmask 999176
  %v908 = vsel %vm907, %v857, -inf
  %909 = vmax.xlane.f32.xlu0 %v908
  %v910 = vpop.xlane.xlu0 %909
  %vm911 = vcmp.ge.f32.partialorder %v857, %v910
  %912 = vrot.lane.b32.xlu0 %v848, 97
  %v913 = vpop.permute.xlu0 %912
  %v914 = vsel %vm911, %v913, 25
  %v915 = vsel %vm907, %v914, 2147483647
  %v916 = vand.u32 %v915, 65535
  %v917 = vshra.s32 %v915, 16
  %v918 = vcvt.s32.f32 %v916
  %v919 = vcvt.s32.f32 %v917
  %920 = vmin.xlane.f32.xlu0 %v919
  %v921 = vpop.xlane.xlu0 %920
  %vm922 = vcmp.eq.f32.partialorder %v919, %v921
  %v923 = vsel %vm922, %v918, inf
  %924 = vmin.xlane.f32.xlu0 %v923
  %v925 = vpop.xlane.xlu0 %924
  %v926 = vcvt.f32.s32 %v925
  %v927 = vcvt.f32.s32 %v921
  %v928 = vshll.u32 %v927, 16
  %v929 = vadd.s32 %v928, %v926
  %vm930 = vcmp.eq.s32.totalorder %v848, %v929
  %v931 = vsel %vm930, 1, 0
  %v932 = vcvt.s32.f32 %v931
  %934 = vrot.lane.b32.xlu0 %v799, 103
  %v935 = vpop.permute.xlu0 %934
  %v937 = vmul.f32 %v932, %v935
  %v938 = vsel %vm885, %v937, 0.0
  %939 = vadd.xlane.f32.xlu0 %v938
  %v940 = vpop.xlane.xlu0 %939
  %942 = vrot.lane.b32.xlu0 %v849, 3
  %v943 = vpop.permute.xlu0 %942
  %944 = vrot.lane.b32.xlu0 %v850, 3
  %v945 = vpop.permute.xlu0 %944
  %vm946 = vcmask 23552
  %v947 = vsel %vm946, %v943, %v945
  %v949 = vmul.f32 %v932, %v947
  %v950 = vsel %vm885, %v949, 0.0
  %951 = vadd.xlane.f32.xlu0 %v950
  %v952 = vpop.xlane.xlu0 %951
  %v953 = vmul.f32 %v846, %v952
  %v954 = vadd.f32 %v953, %v940
  %vm955 = vcmp.eq.s32.totalorder %v848, 1
  %957 = vset.pattern.permute.xlu0 1
  %958 = vperm.xlu0 %957, %v954
  %v959 = vpop.permute.xlu0 %958
  %v961 = vsel %vm955, %v959, 0.0
  %v962 = vadd.f32 %v906, %v961
  %v963 = vand.u32 2147483647, %v840
  %v964 = vlog2.pop %v963
  %v965 = vmul.f32 %v964, 0.6931472
  %v966 = vadd.f32 %v965, %v855
  %vm967 = vcmask 1048528
  %v968 = vsel %vm967, %v857, -inf
  %vm969 = vcmask 154624
  %v970 = vsel %vm969, %v966, -inf
  %v971 = vmax.f32 %v968, %v970
  %972 = vmax.xlane.f32.xlu0 %v971
  %v973 = vpop.xlane.xlu0 %972
  %vm974 = vcmp.ge.f32.partialorder %v857, %v973
  %vm975 = vcmp.ge.f32.partialorder %v966, %v973
  %976 = vrot.lane.b32.xlu0 %v848, 122
  %v977 = vpop.permute.xlu0 %976
  %v978 = vsel %vm974, %v977, 25
  %v979 = vsel %vm975, %v977, 25
  %v980 = vsel %vm967, %v978, 2147483647
  %v981 = vsel %vm969, %v979, 2147483647
  %vm982 = vcmp.lt.s32.totalorder %v980, %v981
  %v983 = vsel %vm982, %v980, %v981
  %v984 = vand.u32 %v983, 65535
  %v985 = vshra.s32 %v983, 16
  %v986 = vcvt.s32.f32 %v984
  %v987 = vcvt.s32.f32 %v985
  %988 = vmin.xlane.f32.xlu0 %v987
  %v989 = vpop.xlane.xlu0 %988
  %vm990 = vcmp.eq.f32.partialorder %v987, %v989
  %v991 = vsel %vm990, %v986, inf
  %992 = vmin.xlane.f32.xlu0 %v991
  %v993 = vpop.xlane.xlu0 %992
  %v994 = vcvt.f32.s32 %v993
  %v995 = vcvt.f32.s32 %v989
  %v996 = vshll.u32 %v995, 16
  %v997 = vadd.s32 %v996, %v994
  %vm998 = vcmp.eq.s32.totalorder %v848, %v997
  %v999 = vsel %vm998, 1, 0
  %v1000 = vcvt.s32.f32 %v999
  %1001 = vrot.lane.b32.xlu0 %v799, 78
  %v1002 = vpop.permute.xlu0 %1001
  %v1004 = vmul.f32 %v1000, %v1002
  %v1005 = vsel %vm885, %v1004, 0.0
  %1006 = vadd.xlane.f32.xlu0 %v1005
  %v1007 = vpop.xlane.xlu0 %1006
  %1008 = vrot.lane.b32.xlu0 %v850, 106
  %v1009 = vpop.permute.xlu0 %1008
  %v1011 = vmul.f32 %v1000, %v1009
  %v1012 = vsel %vm885, %v1011, 0.0
  %1013 = vadd.xlane.f32.xlu0 %v1012
  %v1014 = vpop.xlane.xlu0 %1013
  %v1015 = vmul.f32 %v846, %v1014
  %v1016 = vadd.f32 %v1015, %v1007
  %vm1017 = vcmp.eq.s32.totalorder %v848, 2
  %1019 = vset.pattern.permute.xlu0 2
  %1020 = vperm.xlu0 %1019, %v1016
  %v1021 = vpop.permute.xlu0 %1020
  %v1023 = vsel %vm1017, %v1021, 0.0
  %v1024 = vadd.f32 %v962, %v1023
  %vm1025 = vcmask 359576
  %v1026 = vsel %vm1025, %v966, -inf
  %1027 = vmax.xlane.f32.xlu0 %v1026
  %v1028 = vpop.xlane.xlu0 %1027
  %vm1029 = vcmp.ge.f32.partialorder %v966, %v1028
  %1030 = vrot.lane.b32.xlu0 %v848, 19
  %v1031 = vpop.permute.xlu0 %1030
  %v1032 = vsel %vm1029, %v1031, 25
  %v1033 = vsel %vm1025, %v1032, 2147483647
  %v1034 = vand.u32 %v1033, 65535
  %v1035 = vshra.s32 %v1033, 16
  %v1036 = vcvt.s32.f32 %v1034
  %v1037 = vcvt.s32.f32 %v1035
  %1038 = vmin.xlane.f32.xlu0 %v1037
  %v1039 = vpop.xlane.xlu0 %1038
  %vm1040 = vcmp.eq.f32.partialorder %v1037, %v1039
  %v1041 = vsel %vm1040, %v1036, inf
  %1042 = vmin.xlane.f32.xlu0 %v1041
  %v1043 = vpop.xlane.xlu0 %1042
  %v1044 = vcvt.f32.s32 %v1043
  %v1045 = vcvt.f32.s32 %v1039
  %v1046 = vshll.u32 %v1045, 16
  %v1047 = vadd.s32 %v1046, %v1044
  %vm1048 = vcmp.eq.s32.totalorder %v848, %v1047
  %v1049 = vsel %vm1048, 1, 0
  %v1050 = vcvt.s32.f32 %v1049
  %1051 = vrot.lane.b32.xlu0 %v799, 53
  %v1052 = vpop.permute.xlu0 %1051
  %v1054 = vmul.f32 %v1050, %v1052
  %v1055 = vsel %vm885, %v1054, 0.0
  %1056 = vadd.xlane.f32.xlu0 %v1055
  %v1057 = vpop.xlane.xlu0 %1056
  %1058 = vrot.lane.b32.xlu0 %v850, 81
  %v1059 = vpop.permute.xlu0 %1058
  %v1061 = vmul.f32 %v1050, %v1059
  %v1062 = vsel %vm885, %v1061, 0.0
  %1063 = vadd.xlane.f32.xlu0 %v1062
  %v1064 = vpop.xlane.xlu0 %1063
  %v1065 = vmul.f32 %v846, %v1064
  %v1066 = vadd.f32 %v1065, %v1057
  %vm1067 = vcmp.eq.s32.totalorder %v848, 3
  %1069 = vset.pattern.permute.xlu0 3
  %1070 = vperm.xlu0 %1069, %v1066
  %v1071 = vpop.permute.xlu0 %1070
  %v1073 = vsel %vm1067, %v1071, 0.0
  %v1074 = vadd.f32 %v1024, %v1073
  %vm1075 = vcmask 31744
  %1076 = vst.msk [vmem:[%s11] sm:$0xff] %vm1075, %v1074
  // Predicated region
  $region46: #{backward_forward.3} parent=0 // pred_check
    _
  $region47: #{backward_forward.3} parent=0 // pred_check_branch
    %1078 = sbr.rel (0) target = $region49
  $region48: #{backward_forward.3} parent=0 // pred_region
    _
  $region49: #{backward_forward.3} parent=0 // pred_fallthru
    _
  // Predicated region
  $region50: #{backward_forward.3} parent=0 // pred_check
    _
  $region51: #{backward_forward.3} parent=0 // pred_check_branch
    %1080 = sbr.rel (0) target = $region53
  $region52: #{backward_forward.3} parent=0 // pred_region
    _
  $region53: #{backward_forward.3} parent=0 // pred_fallthru
    _

</llo_original>
